<compile_context>
chip_gen: v7x
topology: tpu7x:2x2x1
jax: 0.10.0
libtpu: 0.0.40
codegen_flags: <defaults>
</compile_context>

<pallas_src>
from functools import partial

import numpy as np
import jax
import jax.numpy as jnp
from jax.experimental import pallas as pl
from jax.experimental.pallas import tpu as pltpu


# ----------------------------- Pallas kernel --------------------------------
def _decoder_block_kernel(x_ref, w1_ref, b1_ref, w2_ref, b2_ref, w3_ref, b3_ref,
                          o_ref, lhs_ref, *, W, HW, C4):
    f32 = jnp.float32
    bf16 = jnp.bfloat16
    N = x_ref.shape[-1]                     # TB * HW lanes (whole images per block)

    # ---- conv1 (1x1) + folded BN1 + ReLU -> y1 : (C4, N) ----
    y1 = jnp.dot(w1_ref[...], x_ref[...], preferred_element_type=f32) + b1_ref[...]
    y1 = jnp.maximum(y1, 0.0)

    # ---- border masks from one (1, N) lane iota, broadcast over sublanes ----
    col = jax.lax.broadcasted_iota(jnp.int32, (1, N), 1)
    has_right = (col % W) != (W - 1)        # pixel has a right neighbour in-image
    has_below = (col % HW) < (HW - W)       # pixel has a neighbour below in-image

    # ---- stacked LHS [y1 ; shift_down ; shift_right ; shift_down_right] ----
    # Shifts are lane rolls (XLU); the down-right shift is derived from the
    # already shifted-down rows, so only two rolls are issued.
    lhs_ref[0:C4, :] = y1
    lhs_ref[C4:2 * C4, :] = jnp.where(has_below,
                                      pltpu.roll(y1, N - W, axis=1), 0.0)
    top = lhs_ref[0:2 * C4, :]              # [y1 ; shift_down]
    lhs_ref[2 * C4:4 * C4, :] = jnp.where(has_right,
                                          pltpu.roll(top, N - 1, axis=1), 0.0)

    # ---- ConvTranspose2d(3x3, stride=2, pad=1, out_pad=1): one dense matmul ----
    # Row blocks of w2 = output parity planes [ee; eo; oe; oo]; column blocks
    # contract against [identity | down | right | down-right] rows of the LHS.
    p = jnp.dot(w2_ref[...], lhs_ref[...].astype(bf16), preferred_element_type=f32)
    acc = jnp.maximum(p + b2_ref[...], 0.0)                 # folded BN2 + ReLU

    # ---- conv3 (1x1, block-diagonal over planes) + folded BN3 + ReLU ----
    z = jnp.dot(w3_ref[...], acc.astype(bf16), preferred_element_type=f32)
    o_ref[...] = jnp.maximum(z + b3_ref[...], 0.0)          # (4*Nf, N), lane-dense


# ------------------------------ wrapper (glue) -------------------------------
def decoder_block_forward(x_nchw, params):
    eps = 1e-5
    B, Cin, H, W = x_nchw.shape
    C4 = Cin // 4
    Nf = params["w3"].shape[0]
    HW = H * W
    f32, bf16 = jnp.float32, jnp.bfloat16

    # ---- fold eval-mode BN into conv weights / biases (channel-major) ----
    g1, be1, m1, v1 = params["bn1"]
    s1 = g1 / jnp.sqrt(v1 + eps)
    w1m = params["w1"][:, :, 0, 0] * s1[:, None]                      # (C4, Cin)
    b1c = ((params["b1"] - m1) * s1 + be1).reshape(C4, 1)

    g2, be2, m2, v2 = params["bn2"]
    s2 = g2 / jnp.sqrt(v2 + eps)
    w2 = params["w2"]                                                 # (Ci, Co, 3, 3)

    def tap(kh, kw):                                                  # (Co, Ci), BN2 folded
        return (w2[:, :, kh, kw] * s2[None, :]).T

    Zb = jnp.zeros((C4, C4), f32)
    # rows = parity planes [ee; eo; oe; oo]; cols = [id | down | right | down-right]
    w2stack = jnp.concatenate([
        jnp.concatenate([tap(1, 1), Zb,        Zb,        Zb       ], axis=1),
        jnp.concatenate([tap(1, 2), Zb,        tap(1, 0), Zb       ], axis=1),
        jnp.concatenate([tap(2, 1), tap(0, 1), Zb,        Zb       ], axis=1),
        jnp.concatenate([tap(2, 2), tap(0, 2), tap(2, 0), tap(0, 0)], axis=1),
    ], axis=0)                                                        # (4*C4, 4*C4)
    b2c = jnp.tile(((params["b2"] - m2) * s2 + be2).reshape(C4, 1), (4, 1))

    g3, be3, m3, v3 = params["bn3"]
    s3 = g3 / jnp.sqrt(v3 + eps)
    w3m = params["w3"][:, :, 0, 0] * s3[:, None]                      # (Nf, C4)
    w3blk = jnp.kron(jnp.eye(4, dtype=f32), w3m)                      # (4*Nf, 4*C4)
    b3c = jnp.tile(((params["b3"] - m3) * s3 + be3).reshape(Nf, 1), (4, 1))

    # ---- channel-major input: (Cin, B*HW), batches concatenated along lanes ----
    x_cm = jnp.transpose(x_nchw.reshape(B, Cin, HW), (1, 0, 2)).reshape(Cin, B * HW)
    x_cm = x_cm.astype(bf16)

    # Fold whole images into each grid step (block must cover whole images so the
    # in-kernel border masks also act as image/batch-boundary masks — no halo).
    TB = B
    while TB > 1 and (TB * HW > 4096 or B % TB != 0):
        TB -= 1
    NB = TB * HW
    num_blocks = B // TB
    assert num_blocks == 1 or NB % 128 == 0, "lane-block must be a multiple of 128"

    def const_spec(shape):
        return pl.BlockSpec(shape, lambda i: (0, 0))

    grid_spec = pltpu.PrefetchScalarGridSpec(
        num_scalar_prefetch=0,
        grid=(num_blocks,),
        in_specs=[
            pl.BlockSpec((Cin, NB), lambda i: (0, i)),
            const_spec((C4, Cin)), const_spec((C4, 1)),
            const_spec((4 * C4, 4 * C4)), const_spec((4 * C4, 1)),
            const_spec((4 * Nf, 4 * C4)), const_spec((4 * Nf, 1)),
        ],
        out_specs=pl.BlockSpec((4 * Nf, NB), lambda i: (0, i)),
        scratch_shapes=[pltpu.VMEM((4 * C4, NB), jnp.float32)],
    )

    out = pl.pallas_call(
        partial(_decoder_block_kernel, W=W, HW=HW, C4=C4),
        grid_spec=grid_spec,
        out_shape=jax.ShapeDtypeStruct((4 * Nf, B * HW), jnp.float32),
        compiler_params=pltpu.CompilerParams(
            dimension_semantics=("parallel",),
            vmem_limit_bytes=32 * 1024 * 1024,
        ),
    )(x_cm, w1m.astype(bf16), b1c.astype(f32), w2stack.astype(bf16), b2c.astype(f32),
      w3blk.astype(bf16), b3c.astype(f32))

    # ---- tiny epilogue: de-interleave parity planes -> NCHW (B, Nf, 2H, 2W) ----
    y = out.reshape(2, 2, Nf, B, H, W)                # (row-par, col-par, c, b, h, w)
    y = jnp.transpose(y, (3, 2, 4, 0, 5, 1))          # (b, c, h, row-par, w, col-par)
    return y.reshape(B, Nf, 2 * H, 2 * W)


# ------------------------- deterministic parameters --------------------------
def init_params(key, in_channels, n_filters):
    C4 = in_channels // 4
    ks = jax.random.split(key, 18)

    def u(k, shape, fan_in):
        bound = 1.0 / np.sqrt(fan_in)
        return jax.random.uniform(k, shape, jnp.float32, -bound, bound)

    def bn(k0, k1, k2, k3, c):
        gamma = jax.random.uniform(k0, (c,), jnp.float32, 0.5, 1.5)
        beta = 0.1 * jax.random.normal(k1, (c,), jnp.float32)
        mean = 0.1 * jax.random.normal(k2, (c,), jnp.float32)
        var = jax.random.uniform(k3, (c,), jnp.float32, 0.5, 1.5)
        return (gamma, beta, mean, var)

    return {
        "w1": u(ks[0], (C4, in_channels, 1, 1), in_channels),
        "b1": u(ks[1], (C4,), in_channels),
        "w2": u(ks[2], (C4, C4, 3, 3), C4 * 9),           # ConvTranspose2d: (Cin, Cout, kh, kw)
        "b2": u(ks[3], (C4,), C4 * 9),
        "w3": u(ks[4], (n_filters, C4, 1, 1), C4),
        "b3": u(ks[5], (n_filters,), C4),
        "bn1": bn(ks[6], ks[7], ks[8], ks[9], C4),
        "bn2": bn(ks[10], ks[11], ks[12], ks[13], C4),
        "bn3": bn(ks[14], ks[15], ks[16], ks[17], n_filters),
    }


# ----------------------------- numpy reference -------------------------------
def reference_forward(x_nchw, p):
    eps = 1e-5
    x = np.asarray(x_nchw, np.float64)

    def bn(z, stats):
        g, b, m, v = (np.asarray(t, np.float64) for t in stats)
        return (z - m[None, :, None, None]) / np.sqrt(v[None, :, None, None] + eps) \
            * g[None, :, None, None] + b[None, :, None, None]

    w1 = np.asarray(p["w1"], np.float64)[:, :, 0, 0]
    z = np.einsum("bihw,oi->bohw", x, w1) + np.asarray(p["b1"], np.float64)[None, :, None, None]
    z = np.maximum(bn(z, p["bn1"]), 0.0)

    w2 = np.asarray(p["w2"], np.float64)
    B, C, H, W = z.shape
    Co = w2.shape[1]
    out = np.zeros((B, Co, 2 * H, 2 * W), np.float64)
    for kh in range(3):
        for kw in range(3):
            contrib = np.einsum("bihw,io->bohw", z, w2[:, :, kh, kw])
            for m in range(H):
                oh = 2 * m - 1 + kh
                if not (0 <= oh < 2 * H):
                    continue
                for n in range(W):
                    ow = 2 * n - 1 + kw
                    if 0 <= ow < 2 * W:
                        out[:, :, oh, ow] += contrib[:, :, m, n]
    out += np.asarray(p["b2"], np.float64)[None, :, None, None]
    out = np.maximum(bn(out, p["bn2"]), 0.0)

    w3 = np.asarray(p["w3"], np.float64)[:, :, 0, 0]
    z = np.einsum("bihw,oi->bohw", out, w3) + np.asarray(p["b3"], np.float64)[None, :, None, None]
    z = np.maximum(bn(z, p["bn3"]), 0.0)
    return z


# ----------------------------------- main ------------------------------------
if __name__ == "__main__":
    key = jax.random.PRNGKey(0)
    kx, kp = jax.random.split(key)

    in_channels, n_filters = 16, 8
    B, H, W = 2, 16, 16

    x = jax.random.normal(kx, (B, in_channels, H, W), jnp.float32)   # NCHW like PyTorch
    params = init_params(kp, in_channels, n_filters)

    fwd = jax.jit(decoder_block_forward)
    out = jax.block_until_ready(fwd(x, params))

    ref = reference_forward(np.asarray(x), params)
    assert out.shape == (B, n_filters, 2 * H, 2 * W), out.shape
    np.testing.assert_allclose(np.asarray(out, np.float64), ref, rtol=2e-2, atol=2e-2)

    print("KERNEL_OK")
</pallas_src>

<mosaic_0001>
module attributes {stable_mosaic.version = 11 : i64} {
  func.func @_decoder_block_kernel(%arg0: i32, %arg1: memref<16x512xbf16, #tpu.memory_space<vmem>>, %arg2: memref<4x16xbf16, #tpu.memory_space<vmem>>, %arg3: memref<4x1xf32, #tpu.memory_space<vmem>>, %arg4: memref<16x16xbf16, #tpu.memory_space<vmem>>, %arg5: memref<16x1xf32, #tpu.memory_space<vmem>>, %arg6: memref<32x16xbf16, #tpu.memory_space<vmem>>, %arg7: memref<32x1xf32, #tpu.memory_space<vmem>>, %arg8: memref<32x512xf32, #tpu.memory_space<vmem>>, %arg9: memref<16x512xf32, #tpu.memory_space<vmem>>) attributes {dimension_semantics = [#tpu.dimension_semantics<parallel>], iteration_bounds = array<i64: 1>, scalar_prefetch = 0 : i64, scratch_operands = 1 : i64, tpu.core_type = #tpu.core_type<tc>, window_params = [{transform_indices = @transform_0, window_bounds = array<i64: 16, 512>}, {pipeline_mode = #tpu.pipeline_mode<synchronous>, transform_indices = @transform_1, window_bounds = array<i64: 4, 16>}, {pipeline_mode = #tpu.pipeline_mode<synchronous>, transform_indices = @transform_2, window_bounds = array<i64: 4, 1>}, {pipeline_mode = #tpu.pipeline_mode<synchronous>, transform_indices = @transform_3, window_bounds = array<i64: 16, 16>}, {pipeline_mode = #tpu.pipeline_mode<synchronous>, transform_indices = @transform_4, window_bounds = array<i64: 16, 1>}, {pipeline_mode = #tpu.pipeline_mode<synchronous>, transform_indices = @transform_5, window_bounds = array<i64: 32, 16>}, {pipeline_mode = #tpu.pipeline_mode<synchronous>, transform_indices = @transform_6, window_bounds = array<i64: 32, 1>}, {transform_indices = @transform_7, window_bounds = array<i64: 32, 512>}]} {
    %c0 = arith.constant 0 : index
    %c0_0 = arith.constant 0 : index
    %0 = vector.load %arg2[%c0, %c0_0] : memref<4x16xbf16, #tpu.memory_space<vmem>>, vector<4x16xbf16>
    %c0_1 = arith.constant 0 : index
    %c0_2 = arith.constant 0 : index
    %1 = vector.load %arg1[%c0_1, %c0_2] : memref<16x512xbf16, #tpu.memory_space<vmem>>, vector<16x512xbf16>
    %cst = arith.constant dense<0.000000e+00> : vector<4x512xf32>
    %2 = tpu.matmul %0, %1, %cst {dimension_numbers = #tpu.dot_dimension_numbers<[1], [0], [0], [1], [0, 0, 1, 1], [], []>} : vector<4x16xbf16>, vector<16x512xbf16>, vector<4x512xf32> -> vector<4x512xf32>
    %c0_3 = arith.constant 0 : index
    %c0_4 = arith.constant 0 : index
    %3 = vector.load %arg3[%c0_3, %c0_4] : memref<4x1xf32, #tpu.memory_space<vmem>>, vector<4x1xf32>
    %4 = vector.broadcast %3 : vector<4x1xf32> to vector<4x512xf32>
    %5 = arith.addf %2, %4 : vector<4x512xf32>
    %cst_5 = arith.constant 0.000000e+00 : f32
    %6 = vector.broadcast %cst_5 : f32 to vector<4x512xf32>
    %7 = arith.maximumf %5, %6 : vector<4x512xf32>
    %8 = tpu.iota {dimensions = array<i32: 1>} : vector<1x512xi32>
    %c16_i32 = arith.constant 16 : i32
    %c0_i32 = arith.constant 0 : i32
    %9 = arith.cmpi eq, %c16_i32, %c0_i32 : i32
    %c1_i32 = arith.constant 1 : i32
    %10 = arith.select %9, %c1_i32, %c16_i32 : i32
    %11 = vector.broadcast %10 : i32 to vector<1x512xi32>
    %12 = arith.remsi %8, %11 : vector<1x512xi32>
    %c0_i32_6 = arith.constant 0 : i32
    %13 = vector.broadcast %c0_i32_6 : i32 to vector<1x512xi32>
    %14 = arith.cmpi ne, %12, %13 : vector<1x512xi32>
    %c0_i32_7 = arith.constant 0 : i32
    %15 = vector.broadcast %c0_i32_7 : i32 to vector<1x512xi32>
    %16 = arith.cmpi slt, %12, %15 : vector<1x512xi32>
    %c0_i32_8 = arith.constant 0 : i32
    %17 = arith.cmpi slt, %10, %c0_i32_8 : i32
    %18 = vector.broadcast %17 : i1 to vector<1x512xi1>
    %19 = vector.broadcast %18 : vector<1x512xi1> to vector<1x512xi1>
    %20 = arith.xori %16, %19 : vector<1x512xi1>
    %21 = arith.andi %20, %14 : vector<1x512xi1>
    %22 = vector.broadcast %10 : i32 to vector<1x512xi32>
    %23 = arith.addi %12, %22 : vector<1x512xi32>
    %24 = arith.select %21, %23, %12 : vector<1x512xi1>, vector<1x512xi32>
    %c15_i32 = arith.constant 15 : i32
    %25 = vector.broadcast %c15_i32 : i32 to vector<1x512xi32>
    %26 = arith.cmpi ne, %24, %25 : vector<1x512xi32>
    %c256_i32 = arith.constant 256 : i32
    %c0_i32_9 = arith.constant 0 : i32
    %27 = arith.cmpi eq, %c256_i32, %c0_i32_9 : i32
    %c1_i32_10 = arith.constant 1 : i32
    %28 = arith.select %27, %c1_i32_10, %c256_i32 : i32
    %29 = vector.broadcast %28 : i32 to vector<1x512xi32>
    %30 = arith.remsi %8, %29 : vector<1x512xi32>
    %c0_i32_11 = arith.constant 0 : i32
    %31 = vector.broadcast %c0_i32_11 : i32 to vector<1x512xi32>
    %32 = arith.cmpi ne, %30, %31 : vector<1x512xi32>
    %c0_i32_12 = arith.constant 0 : i32
    %33 = vector.broadcast %c0_i32_12 : i32 to vector<1x512xi32>
    %34 = arith.cmpi slt, %30, %33 : vector<1x512xi32>
    %c0_i32_13 = arith.constant 0 : i32
    %35 = arith.cmpi slt, %28, %c0_i32_13 : i32
    %36 = vector.broadcast %35 : i1 to vector<1x512xi1>
    %37 = vector.broadcast %36 : vector<1x512xi1> to vector<1x512xi1>
    %38 = arith.xori %34, %37 : vector<1x512xi1>
    %39 = arith.andi %38, %32 : vector<1x512xi1>
    %40 = vector.broadcast %28 : i32 to vector<1x512xi32>
    %41 = arith.addi %30, %40 : vector<1x512xi32>
    %42 = arith.select %39, %41, %30 : vector<1x512xi1>, vector<1x512xi32>
    %c240_i32 = arith.constant 240 : i32
    %43 = vector.broadcast %c240_i32 : i32 to vector<1x512xi32>
    %44 = arith.cmpi slt, %42, %43 : vector<1x512xi32>
    %c0_14 = arith.constant 0 : index
    %c0_15 = arith.constant 0 : index
    %45 = vector.load %arg9[%c0_14, %c0_15] : memref<16x512xf32, #tpu.memory_space<vmem>>, vector<4x512xf32>
    tpu.vector_store %arg9[%c0_14, %c0_15], %7 {strides = array<i32>} : memref<16x512xf32, #tpu.memory_space<vmem>>, vector<4x512xf32>,
    %c496_i32 = arith.constant 496 : i32
    %46 = tpu.dynamic_rotate %7 by %c496_i32 dim 1 : vector<4x512xf32>, i32 -> vector<4x512xf32>
    %cst_16 = arith.constant 0.000000e+00 : f32
    %47 = vector.shape_cast %44 : vector<1x512xi1> to vector<1x512xi1>
    %48 = vector.broadcast %47 : vector<1x512xi1> to vector<4x512xi1>
    %49 = vector.broadcast %cst_16 : f32 to vector<4x512xf32>
    %50 = arith.select %48, %46, %49 : vector<4x512xi1>, vector<4x512xf32>
    %c4 = arith.constant 4 : index
    %c0_17 = arith.constant 0 : index
    %51 = vector.load %arg9[%c4, %c0_17] : memref<16x512xf32, #tpu.memory_space<vmem>>, vector<4x512xf32>
    tpu.vector_store %arg9[%c4, %c0_17], %50 {strides = array<i32>} : memref<16x512xf32, #tpu.memory_space<vmem>>, vector<4x512xf32>,
    %c0_18 = arith.constant 0 : index
    %c0_19 = arith.constant 0 : index
    %52 = vector.load %arg9[%c0_18, %c0_19] : memref<16x512xf32, #tpu.memory_space<vmem>>, vector<8x512xf32>
    %c511_i32 = arith.constant 511 : i32
    %53 = tpu.dynamic_rotate %52 by %c511_i32 dim 1 : vector<8x512xf32>, i32 -> vector<8x512xf32>
    %cst_20 = arith.constant 0.000000e+00 : f32
    %54 = vector.shape_cast %26 : vector<1x512xi1> to vector<1x512xi1>
    %55 = vector.broadcast %54 : vector<1x512xi1> to vector<8x512xi1>
    %56 = vector.broadcast %cst_20 : f32 to vector<8x512xf32>
    %57 = arith.select %55, %53, %56 : vector<8x512xi1>, vector<8x512xf32>
    %c8 = arith.constant 8 : index
    %c0_21 = arith.constant 0 : index
    %58 = vector.load %arg9[%c8, %c0_21] : memref<16x512xf32, #tpu.memory_space<vmem>>, vector<8x512xf32>
    tpu.vector_store %arg9[%c8, %c0_21], %57 {strides = array<i32>} : memref<16x512xf32, #tpu.memory_space<vmem>>, vector<8x512xf32>,
    %c0_22 = arith.constant 0 : index
    %c0_23 = arith.constant 0 : index
    %59 = vector.load %arg4[%c0_22, %c0_23] : memref<16x16xbf16, #tpu.memory_space<vmem>>, vector<16x16xbf16>
    %c0_24 = arith.constant 0 : index
    %c0_25 = arith.constant 0 : index
    %60 = vector.load %arg9[%c0_24, %c0_25] : memref<16x512xf32, #tpu.memory_space<vmem>>, vector<16x512xf32>
    %61 = arith.truncf %60 : vector<16x512xf32> to vector<16x512xbf16>
    %cst_26 = arith.constant dense<0.000000e+00> : vector<16x512xf32>
    %62 = tpu.matmul %59, %61, %cst_26 {dimension_numbers = #tpu.dot_dimension_numbers<[1], [0], [0], [1], [0, 0, 1, 1], [], []>} : vector<16x16xbf16>, vector<16x512xbf16>, vector<16x512xf32> -> vector<16x512xf32>
    %c0_27 = arith.constant 0 : index
    %c0_28 = arith.constant 0 : index
    %63 = vector.load %arg5[%c0_27, %c0_28] : memref<16x1xf32, #tpu.memory_space<vmem>>, vector<16x1xf32>
    %64 = vector.broadcast %63 : vector<16x1xf32> to vector<16x512xf32>
    %65 = arith.addf %62, %64 : vector<16x512xf32>
    %cst_29 = arith.constant 0.000000e+00 : f32
    %66 = vector.broadcast %cst_29 : f32 to vector<16x512xf32>
    %67 = arith.maximumf %65, %66 : vector<16x512xf32>
    %c0_30 = arith.constant 0 : index
    %c0_31 = arith.constant 0 : index
    %68 = vector.load %arg6[%c0_30, %c0_31] : memref<32x16xbf16, #tpu.memory_space<vmem>>, vector<32x16xbf16>
    %69 = arith.truncf %67 : vector<16x512xf32> to vector<16x512xbf16>
    %cst_32 = arith.constant dense<0.000000e+00> : vector<32x512xf32>
    %70 = tpu.matmul %68, %69, %cst_32 {dimension_numbers = #tpu.dot_dimension_numbers<[1], [0], [0], [1], [0, 0, 1, 1], [], []>} : vector<32x16xbf16>, vector<16x512xbf16>, vector<32x512xf32> -> vector<32x512xf32>
    %c0_33 = arith.constant 0 : index
    %c0_34 = arith.constant 0 : index
    %71 = vector.load %arg7[%c0_33, %c0_34] : memref<32x1xf32, #tpu.memory_space<vmem>>, vector<32x1xf32>
    %72 = vector.broadcast %71 : vector<32x1xf32> to vector<32x512xf32>
    %73 = arith.addf %70, %72 : vector<32x512xf32>
    %cst_35 = arith.constant 0.000000e+00 : f32
    %74 = vector.broadcast %cst_35 : f32 to vector<32x512xf32>
    %75 = arith.maximumf %73, %74 : vector<32x512xf32>
    %c0_36 = arith.constant 0 : index
    %c0_37 = arith.constant 0 : index
    %76 = vector.load %arg8[%c0_36, %c0_37] : memref<32x512xf32, #tpu.memory_space<vmem>>, vector<32x512xf32>
    tpu.vector_store %arg8[%c0_36, %c0_37], %75 {strides = array<i32>} : memref<32x512xf32, #tpu.memory_space<vmem>>, vector<32x512xf32>,
    return
  }
  func.func @transform_0(%arg0: i32) -> (i32, i32) {
    %c0_i32 = arith.constant 0 : i32
    %c0_i32_0 = arith.constant 0 : i32
    return %c0_i32, %arg0 : i32, i32
  }
  func.func @transform_1(%arg0: i32) -> (i32, i32) {
    %c0_i32 = arith.constant 0 : i32
    %c0_i32_0 = arith.constant 0 : i32
    %c0_i32_1 = arith.constant 0 : i32
    return %c0_i32, %c0_i32_0 : i32, i32
  }
  func.func @transform_2(%arg0: i32) -> (i32, i32) {
    %c0_i32 = arith.constant 0 : i32
    %c0_i32_0 = arith.constant 0 : i32
    %c0_i32_1 = arith.constant 0 : i32
    return %c0_i32, %c0_i32_0 : i32, i32
  }
  func.func @transform_3(%arg0: i32) -> (i32, i32) {
    %c0_i32 = arith.constant 0 : i32
    %c0_i32_0 = arith.constant 0 : i32
    %c0_i32_1 = arith.constant 0 : i32
    return %c0_i32, %c0_i32_0 : i32, i32
  }
  func.func @transform_4(%arg0: i32) -> (i32, i32) {
    %c0_i32 = arith.constant 0 : i32
    %c0_i32_0 = arith.constant 0 : i32
    %c0_i32_1 = arith.constant 0 : i32
    return %c0_i32, %c0_i32_0 : i32, i32
  }
  func.func @transform_5(%arg0: i32) -> (i32, i32) {
    %c0_i32 = arith.constant 0 : i32
    %c0_i32_0 = arith.constant 0 : i32
    %c0_i32_1 = arith.constant 0 : i32
    return %c0_i32, %c0_i32_0 : i32, i32
  }
  func.func @transform_6(%arg0: i32) -> (i32, i32) {
    %c0_i32 = arith.constant 0 : i32
    %c0_i32_0 = arith.constant 0 : i32
    %c0_i32_1 = arith.constant 0 : i32
    return %c0_i32, %c0_i32_0 : i32, i32
  }
  func.func @transform_7(%arg0: i32) -> (i32, i32) {
    %c0_i32 = arith.constant 0 : i32
    %c0_i32_0 = arith.constant 0 : i32
    return %c0_i32, %arg0 : i32, i32
  }
}

</mosaic_0001>

<llo_original>
// kernel: decoder_block_forward.1
$region0: #{decoder_block_forward.1}
  #allocation0 [shape = 'u32[]', space=smem, size = 0x4, offset = 0x4, fixed_abs, tag = 'smem constant byte address 0x4 - core index']
  #allocation1 [shape = 'u32[144,128]{1,0:T(1,128)}', space=vmem, size = 0x12000, scoped, tag = 'internal scratch']
  #allocation2 [shape = 'f32[16,512]{1,0:T(8,128)}', space=vmem, size = 0x8000, scoped, tag = 'scratch operand']
  %s0 = inlined_call_operand.vmem [shape: bf16[16,512], index: 0, kind: input, shape index: {}]
  %s1 = inlined_call_operand.vmem [shape: bf16[4,16], index: 1, kind: input, shape index: {}]
  %s2 = inlined_call_operand.vmem [shape: f32[4,1], index: 2, kind: input, shape index: {}]
  %s3 = inlined_call_operand.vmem [shape: bf16[16,16], index: 3, kind: input, shape index: {}]
  %s4 = inlined_call_operand.vmem [shape: f32[16,1], index: 4, kind: input, shape index: {}]
  %s5 = inlined_call_operand.vmem [shape: bf16[32,16], index: 5, kind: input, shape index: {}]
  %s6 = inlined_call_operand.vmem [shape: f32[32,1], index: 6, kind: input, shape index: {}]
  %s7 = inlined_call_operand.vmem [shape: f32[32,512], index: 7, kind: output, shape index: {}]
  %s8 = sld [smem:[#allocation0]]
  $region38: #{decoder_block_forward.1} parent=0
    _
  %s10 = ssub.s32 1, %s8
  %s11 = scalar_select 0, %s10, %s8
  // Predicated region
  $region2: #{decoder_block_forward.1} parent=0 // pred_check
    _
  $region3: #{decoder_block_forward.1} parent=0 // pred_check_branch
    %13 = sbr.rel (0) target = $region5
  $region4: #{decoder_block_forward.1} parent=0 // pred_region
    _
  $region5: #{decoder_block_forward.1} parent=0 // pred_fallthru
    _
  // Predicated region
  $region6: #{decoder_block_forward.1} parent=0 // pred_check
    _
  $region7: #{decoder_block_forward.1} parent=0 // pred_check_branch
    %15 = sbr.rel (0) target = $region9
  $region8: #{decoder_block_forward.1} parent=0 // pred_region
    _
  $region9: #{decoder_block_forward.1} parent=0 // pred_fallthru
    _
  // Predicated region
  $region10: #{decoder_block_forward.1} parent=0 // pred_check
    _
  $region11: #{decoder_block_forward.1} parent=0 // pred_check_branch
    %17 = sbr.rel (0) target = $region13
  $region12: #{decoder_block_forward.1} parent=0 // pred_region
    _
  $region13: #{decoder_block_forward.1} parent=0 // pred_fallthru
    _
  // Predicated region
  $region14: #{decoder_block_forward.1} parent=0 // pred_check
    _
  $region15: #{decoder_block_forward.1} parent=0 // pred_check_branch
    %19 = sbr.rel (0) target = $region17
  $region16: #{decoder_block_forward.1} parent=0 // pred_region
    _
  $region17: #{decoder_block_forward.1} parent=0 // pred_fallthru
    _
  // Predicated region
  $region18: #{decoder_block_forward.1} parent=0 // pred_check
    _
  $region19: #{decoder_block_forward.1} parent=0 // pred_check_branch
    %21 = sbr.rel (0) target = $region21
  $region20: #{decoder_block_forward.1} parent=0 // pred_region
    _
  $region21: #{decoder_block_forward.1} parent=0 // pred_fallthru
    _
  // Predicated region
  $region22: #{decoder_block_forward.1} parent=0 // pred_check
    _
  $region23: #{decoder_block_forward.1} parent=0 // pred_check_branch
    %23 = sbr.rel (0) target = $region25
  $region24: #{decoder_block_forward.1} parent=0 // pred_region
    _
  $region25: #{decoder_block_forward.1} parent=0 // pred_fallthru
    _
  // Predicated region
  $region26: #{decoder_block_forward.1} parent=0 // pred_check
    _
  $region27: #{decoder_block_forward.1} parent=0 // pred_check_branch
    %25 = sbr.rel (0) target = $region29
  $region28: #{decoder_block_forward.1} parent=0 // pred_region
    _
  $region29: #{decoder_block_forward.1} parent=0 // pred_fallthru
    _
  %v27 = vld [vmem:[%s1] sm:$0x3]
  %v28 = vld [vmem:[%s0] sm:$0xff]
  %v29 = vld [vmem:[%s0 + $0x8] sm:$0xff]
  %v30 = vld [vmem:[%s0 + $0x10] sm:$0xff]
  %v31 = vld [vmem:[%s0 + $0x18] sm:$0xff]
  %v32 = vld [vmem:[%s2] sm:$0xf]
  %34 = vset.pattern.permute.xlu0 0
  %35 = vperm.xlu0 %34, %v32
  %v36 = vpop.permute.xlu0 %35
  %v42 = vunpack.c.l.b16 %v28
  %v43 = vunpack.c.h.b16 %v28
  %v44 = vunpack.c.l.b16 %v29
  %v45 = vunpack.c.h.b16 %v29
  %v46 = vunpack.c.l.b16 %v30
  %v47 = vunpack.c.h.b16 %v30
  %v48 = vunpack.c.l.b16 %v31
  %v49 = vunpack.c.h.b16 %v31
  %v50 = vpack.c.b16 %v46, %v42
  %v51 = vpack.c.b16 %v47, %v43
  %v52 = vpack.c.b16 %v48, %v44
  %v53 = vpack.c.b16 %v49, %v45
  %vm58 = vcmask 130048
  %v60 = vsel %vm58, %v27, 0
  %62 = vmatprep.subr.bf16.mxu0 %v51
  %63 = vmatpush1.bf16.msra.mxu0 %v50
  %64 = vmatprep.subr.bf16.mxu0 0
  %65 = vmatpush1.bf16.msra.mxu0 0
  %66 = vmatprep.subr.bf16.mxu0 0
  %67 = vmatpush1.bf16.msra.mxu0 0
  %68 = vmatprep.subr.bf16.mxu0 0
  %69 = vmatpush1.bf16.msra.mxu0 0
  %70 = vmatprep.subr.bf16.mxu0 0
  %71 = vmatpush1.bf16.msra.mxu0 0
  %72 = vmatprep.subr.bf16.mxu0 0
  %73 = vmatpush1.bf16.msra.mxu0 0
  %74 = vmatprep.subr.bf16.mxu0 0
  %75 = vmatpush1.bf16.msra.mxu0 0
  %76 = vmatprep.subr.bf16.mxu0 0
  %77 = vmatpush1.bf16.msra.mxu0 0
  %78 = vmatprep.subr.bf16.mxu0 0
  %79 = vmatpush1.bf16.msra.mxu0 0
  %80 = vmatprep.subr.bf16.mxu0 0
  %81 = vmatpush1.bf16.msra.mxu0 0
  %82 = vmatprep.subr.bf16.mxu0 0
  %83 = vmatpush1.bf16.msra.mxu0 0
  %84 = vmatprep.subr.bf16.mxu0 0
  %85 = vmatpush1.bf16.msra.mxu0 0
  %86 = vmatprep.subr.bf16.mxu0 0
  %87 = vmatpush1.bf16.msra.mxu0 0
  %88 = vmatprep.subr.bf16.mxu0 0
  %89 = vmatpush1.bf16.msra.mxu0 0
  %90 = vmatprep.subr.bf16.mxu0 0
  %91 = vmatpush1.bf16.msra.mxu0 0
  %92 = vmatprep.subr.bf16.mxu0 0
  %93 = vmatpush1.bf16.msra.mxu0 0
  %94 = vmatprep.mubr.bf16.mxu0 0
  %95 = vmatmul.mubr.bf16.gmra.mrb[0].mxu0 %v60
  %v96 = vpop.f32.mrb[0].mxu0
  %v97 = vadd.f32 %v36, %v96
  %v98 = vpop.f32.mrb[0].mxu0
  %v99 = vadd.f32 %v36, %v98
  %v100 = vpop.f32.mrb[0].mxu0
  %v101 = vpop.f32.mrb[0].mxu0
  %102 = vdwg.mxu0
  %103 = vmatprep.subr.bf16.mxu0 %v53
  %104 = vmatpush1.bf16.msra.mxu0 %v52
  %105 = vmatprep.subr.bf16.mxu0 0
  %106 = vmatpush1.bf16.msra.mxu0 0
  %107 = vmatprep.subr.bf16.mxu0 0
  %108 = vmatpush1.bf16.msra.mxu0 0
  %109 = vmatprep.subr.bf16.mxu0 0
  %110 = vmatpush1.bf16.msra.mxu0 0
  %111 = vmatprep.subr.bf16.mxu0 0
  %112 = vmatpush1.bf16.msra.mxu0 0
  %113 = vmatprep.subr.bf16.mxu0 0
  %114 = vmatpush1.bf16.msra.mxu0 0
  %115 = vmatprep.subr.bf16.mxu0 0
  %116 = vmatpush1.bf16.msra.mxu0 0
  %117 = vmatprep.subr.bf16.mxu0 0
  %118 = vmatpush1.bf16.msra.mxu0 0
  %119 = vmatprep.subr.bf16.mxu0 0
  %120 = vmatpush1.bf16.msra.mxu0 0
  %121 = vmatprep.subr.bf16.mxu0 0
  %122 = vmatpush1.bf16.msra.mxu0 0
  %123 = vmatprep.subr.bf16.mxu0 0
  %124 = vmatpush1.bf16.msra.mxu0 0
  %125 = vmatprep.subr.bf16.mxu0 0
  %126 = vmatpush1.bf16.msra.mxu0 0
  %127 = vmatprep.subr.bf16.mxu0 0
  %128 = vmatpush1.bf16.msra.mxu0 0
  %129 = vmatprep.subr.bf16.mxu0 0
  %130 = vmatpush1.bf16.msra.mxu0 0
  %131 = vmatprep.subr.bf16.mxu0 0
  %132 = vmatpush1.bf16.msra.mxu0 0
  %133 = vmatprep.subr.bf16.mxu0 0
  %134 = vmatpush1.bf16.msra.mxu0 0
  %135 = vmatprep.mubr.bf16.mxu0 0
  %136 = vmatmul.mubr.bf16.gmra.mrb[0].mxu0 %v60
  %v137 = vpop.f32.mrb[0].mxu0
  %v138 = vadd.f32 %v36, %v137
  %v139 = vpop.f32.mrb[0].mxu0
  %v140 = vadd.f32 %v36, %v139
  %v141 = vpop.f32.mrb[0].mxu0
  %v142 = vpop.f32.mrb[0].mxu0
  %143 = vdwg.mxu0
  %v144 = vmax.f32 %v97, 0.0
  %v145 = vmax.f32 %v99, 0.0
  %v146 = vmax.f32 %v138, 0.0
  %v147 = vmax.f32 %v140, 0.0
  %v148 = vlaneseq
  %v149 = vand.u32 %v148, 127
  %v150 = vadd.s32 %v149, 128
  %v151 = vadd.s32 %v149, 256
  %v152 = vadd.s32 %v149, 384
  %vm153 = vcmp.lt.s32.totalorder %v149, 0
  %v154 = vsub.s32 0, %v149
  %v155 = vsel %vm153, %v154, %v149
  %v156 = vshrl.u32 %v155, 4
  %v157 = vand.u32 %v155, 15
  %v158 = vsub.s32 0, %v157
  %v159 = vsel %vm153, %v158, %v157
  %vm160 = vcmp.lt.s32.totalorder %v150, 0
  %v161 = vsub.s32 0, %v150
  %v162 = vsel %vm160, %v161, %v150
  %v163 = vshrl.u32 %v162, 4
  %v164 = vand.u32 %v162, 15
  %v165 = vsub.s32 0, %v164
  %v166 = vsel %vm160, %v165, %v164
  %vm167 = vcmp.lt.s32.totalorder %v151, 0
  %v168 = vsub.s32 0, %v151
  %v169 = vsel %vm167, %v168, %v151
  %v170 = vshrl.u32 %v169, 4
  %v171 = vand.u32 %v169, 15
  %v172 = vsub.s32 0, %v171
  %v173 = vsel %vm167, %v172, %v171
  %vm174 = vcmp.lt.s32.totalorder %v152, 0
  %v175 = vsub.s32 0, %v152
  %v176 = vsel %vm174, %v175, %v152
  %v177 = vshrl.u32 %v176, 4
  %v178 = vand.u32 %v176, 15
  %v179 = vsub.s32 0, %v178
  %v180 = vsel %vm174, %v179, %v178
  %vm181 = vcmp.ne.s32.totalorder %v159, 0
  %vm182 = vcmp.ne.s32.totalorder %v166, 0
  %vm183 = vcmp.ne.s32.totalorder %v173, 0
  %vm184 = vcmp.ne.s32.totalorder %v180, 0
  %vm185 = vcmp.lt.s32.totalorder %v159, 0
  %vm186 = vcmp.lt.s32.totalorder %v166, 0
  %vm187 = vcmp.lt.s32.totalorder %v173, 0
  %vm188 = vcmp.lt.s32.totalorder %v180, 0
  %vm189 = vmand %vm185, %vm181
  %vm190 = vmand %vm186, %vm182
  %vm191 = vmand %vm187, %vm183
  %vm192 = vmand %vm188, %vm184
  %v193 = vadd.s32 %v159, 16
  %v194 = vadd.s32 %v166, 16
  %v195 = vadd.s32 %v173, 16
  %v196 = vadd.s32 %v180, 16
  %v197 = vsel %vm189, %v193, %v159
  %v198 = vsel %vm190, %v194, %v166
  %v199 = vsel %vm191, %v195, %v173
  %v200 = vsel %vm192, %v196, %v180
  %vm201 = vcmp.ne.s32.totalorder %v197, 15
  %vm202 = vcmp.ne.s32.totalorder %v198, 15
  %vm203 = vcmp.ne.s32.totalorder %v199, 15
  %vm204 = vcmp.ne.s32.totalorder %v200, 15
  %vm205 = vcmp.lt.s32.totalorder %v149, 0
  %v206 = vsub.s32 0, %v149
  %v207 = vsel %vm205, %v206, %v149
  %v208 = vshrl.u32 %v207, 8
  %v209 = vand.u32 %v207, 255
  %v210 = vsub.s32 0, %v209
  %v211 = vsel %vm205, %v210, %v209
  %vm212 = vcmp.lt.s32.totalorder %v150, 0
  %v213 = vsub.s32 0, %v150
  %v214 = vsel %vm212, %v213, %v150
  %v215 = vshrl.u32 %v214, 8
  %v216 = vand.u32 %v214, 255
  %v217 = vsub.s32 0, %v216
  %v218 = vsel %vm212, %v217, %v216
  %vm219 = vcmp.lt.s32.totalorder %v151, 0
  %v220 = vsub.s32 0, %v151
  %v221 = vsel %vm219, %v220, %v151
  %v222 = vshrl.u32 %v221, 8
  %v223 = vand.u32 %v221, 255
  %v224 = vsub.s32 0, %v223
  %v225 = vsel %vm219, %v224, %v223
  %vm226 = vcmp.lt.s32.totalorder %v152, 0
  %v227 = vsub.s32 0, %v152
  %v228 = vsel %vm226, %v227, %v152
  %v229 = vshrl.u32 %v228, 8
  %v230 = vand.u32 %v228, 255
  %v231 = vsub.s32 0, %v230
  %v232 = vsel %vm226, %v231, %v230
  %vm233 = vcmp.ne.s32.totalorder %v211, 0
  %vm234 = vcmp.ne.s32.totalorder %v218, 0
  %vm235 = vcmp.ne.s32.totalorder %v225, 0
  %vm236 = vcmp.ne.s32.totalorder %v232, 0
  %vm237 = vcmp.lt.s32.totalorder %v211, 0
  %vm238 = vcmp.lt.s32.totalorder %v218, 0
  %vm239 = vcmp.lt.s32.totalorder %v225, 0
  %vm240 = vcmp.lt.s32.totalorder %v232, 0
  %vm241 = vmand %vm237, %vm233
  %vm242 = vmand %vm238, %vm234
  %vm243 = vmand %vm239, %vm235
  %vm244 = vmand %vm240, %vm236
  %v245 = vadd.s32 %v211, 256
  %v246 = vadd.s32 %v218, 256
  %v247 = vadd.s32 %v225, 256
  %v248 = vadd.s32 %v232, 256
  %v249 = vsel %vm241, %v245, %v211
  %v250 = vsel %vm242, %v246, %v218
  %v251 = vsel %vm243, %v247, %v225
  %v252 = vsel %vm244, %v248, %v232
  %vm253 = vcmp.lt.s32.totalorder %v249, 240
  %vm254 = vcmp.lt.s32.totalorder %v250, 240
  %vm255 = vcmp.lt.s32.totalorder %v251, 240
  %vm256 = vcmp.lt.s32.totalorder %v252, 240
  %257 = vst [vmem:[#allocation2] sm:$0xf] %v144
  %258 = vst [vmem:[#allocation2 + $0x8] sm:$0xf] %v145
  %259 = vst [vmem:[#allocation2 + $0x10] sm:$0xf] %v146
  %260 = vst [vmem:[#allocation2 + $0x18] sm:$0xf] %v147
  %261 = vrot.lane.b32.xlu0 %v144, 112
  %v262 = vpop.permute.xlu0 %261
  %263 = vrot.lane.b32.xlu0 %v145, 112
  %v264 = vpop.permute.xlu0 %263
  %265 = vrot.lane.b32.xlu0 %v146, 112
  %v266 = vpop.permute.xlu0 %265
  %267 = vrot.lane.b32.xlu0 %v147, 112
  %v268 = vpop.permute.xlu0 %267
  %vm269 = vcmp.lt.s32.totalorder %v149, 112
  %v270 = vsel %vm269, %v266, %v268
  %v271 = vsel %vm269, %v264, %v266
  %v272 = vsel %vm269, %v262, %v264
  %v273 = vsel %vm269, %v268, %v262
  %v274 = vsel %vm253, 1, 0
  %v275 = vsel %vm254, 1, 0
  %v276 = vsel %vm255, 1, 0
  %v277 = vsel %vm256, 1, 0
  %vm278 = vcmp.eq.s32.totalorder %v274, 1
  %vm279 = vcmp.eq.s32.totalorder %v275, 1
  %vm280 = vcmp.eq.s32.totalorder %v276, 1
  %vm281 = vcmp.eq.s32.totalorder %v277, 1
  %v282 = vsel %vm278, %v272, 0.0
  %v283 = vsel %vm279, %v271, 0.0
  %v284 = vsel %vm280, %v270, 0.0
  %v285 = vsel %vm281, %v273, 0.0
  %v290 = vrot.slane %v282, 4
  %v291 = vrot.slane %v283, 4
  %v292 = vrot.slane %v284, 4
  %v293 = vrot.slane %v285, 4
  %298 = vst [vmem:[#allocation2] sm:$0xf0] %v290
  %299 = vst [vmem:[#allocation2 + $0x8] sm:$0xf0] %v291
  %300 = vst [vmem:[#allocation2 + $0x10] sm:$0xf0] %v292
  %301 = vst [vmem:[#allocation2 + $0x18] sm:$0xf0] %v293
  %v302 = vld [vmem:[#allocation2] sm:$0xff]
  %v303 = vld [vmem:[#allocation2 + $0x8] sm:$0xff]
  %v304 = vld [vmem:[#allocation2 + $0x10] sm:$0xff]
  %v305 = vld [vmem:[#allocation2 + $0x18] sm:$0xff]
  %306 = vrot.lane.b32.xlu0 %v302, 127
  %v307 = vpop.permute.xlu0 %306
  %308 = vrot.lane.b32.xlu0 %v303, 127
  %v309 = vpop.permute.xlu0 %308
  %310 = vrot.lane.b32.xlu0 %v304, 127
  %v311 = vpop.permute.xlu0 %310
  %312 = vrot.lane.b32.xlu0 %v305, 127
  %v313 = vpop.permute.xlu0 %312
  %vm314 = vcmp.lt.s32.totalorder %v149, 127
  %v315 = vsel %vm314, %v311, %v313
  %v316 = vsel %vm314, %v309, %v311
  %v317 = vsel %vm314, %v307, %v309
  %v318 = vsel %vm314, %v313, %v307
  %v319 = vsel %vm201, 1, 0
  %v320 = vsel %vm202, 1, 0
  %v321 = vsel %vm203, 1, 0
  %v322 = vsel %vm204, 1, 0
  %vm323 = vcmp.eq.s32.totalorder %v319, 1
  %vm324 = vcmp.eq.s32.totalorder %v320, 1
  %vm325 = vcmp.eq.s32.totalorder %v321, 1
  %vm326 = vcmp.eq.s32.totalorder %v322, 1
  %v327 = vsel %vm323, %v317, 0.0
  %v328 = vsel %vm324, %v316, 0.0
  %v329 = vsel %vm325, %v315, 0.0
  %v330 = vsel %vm326, %v318, 0.0
  %331 = vst [vmem:[#allocation2 + $0x20] sm:$0xff] %v327
  %332 = vst [vmem:[#allocation2 + $0x28] sm:$0xff] %v328
  %333 = vst [vmem:[#allocation2 + $0x30] sm:$0xff] %v329
  %334 = vst [vmem:[#allocation2 + $0x38] sm:$0xff] %v330
  %v335 = vld [vmem:[%s3] sm:$0xf]
  %v336 = vld [vmem:[%s3 + $0x4] sm:$0xf]
  %v337 = vld [vmem:[#allocation2] sm:$0xff]
  %v338 = vld [vmem:[#allocation2 + $0x8] sm:$0xff]
  %v339 = vld [vmem:[#allocation2 + $0x10] sm:$0xff]
  %v340 = vld [vmem:[#allocation2 + $0x18] sm:$0xff]
  %v341 = vld [vmem:[#allocation2 + $0x20] sm:$0xff]
  %v342 = vld [vmem:[#allocation2 + $0x28] sm:$0xff]
  %v343 = vld [vmem:[#allocation2 + $0x30] sm:$0xff]
  %v344 = vld [vmem:[#allocation2 + $0x38] sm:$0xff]
  %v345 = vpack.c.bf16 %v341, %v337
  %v346 = vpack.c.bf16 %v342, %v338
  %v347 = vpack.c.bf16 %v343, %v339
  %v348 = vpack.c.bf16 %v344, %v340
  %v349 = vld [vmem:[%s4] sm:$0xff]
  %v350 = vld [vmem:[%s4 + $0x8] sm:$0xff]
  %352 = vset.pattern.permute.xlu0 0
  %353 = vperm.xlu0 %352, %v349
  %v354 = vpop.permute.xlu0 %353
  %357 = vset.pattern.permute.xlu0 0
  %358 = vperm.xlu0 %357, %v350
  %v359 = vpop.permute.xlu0 %358
  %v363 = vunpack.c.l.b16 %v335
  %v364 = vunpack.c.l.b16 %v336
  %v365 = vpack.c.b16 %v364, %v363
  %v367 = vsel %vm58, %v365, 0
  %369 = vmatprep.subr.bf16.mxu0 %v346
  %370 = vmatpush1.bf16.msra.mxu0 %v345
  %371 = vmatprep.subr.bf16.mxu0 0
  %372 = vmatpush1.bf16.msra.mxu0 0
  %373 = vmatprep.subr.bf16.mxu0 0
  %374 = vmatpush1.bf16.msra.mxu0 0
  %375 = vmatprep.subr.bf16.mxu0 0
  %376 = vmatpush1.bf16.msra.mxu0 0
  %377 = vmatprep.subr.bf16.mxu0 0
  %378 = vmatpush1.bf16.msra.mxu0 0
  %379 = vmatprep.subr.bf16.mxu0 0
  %380 = vmatpush1.bf16.msra.mxu0 0
  %381 = vmatprep.subr.bf16.mxu0 0
  %382 = vmatpush1.bf16.msra.mxu0 0
  %383 = vmatprep.subr.bf16.mxu0 0
  %384 = vmatpush1.bf16.msra.mxu0 0
  %385 = vmatprep.subr.bf16.mxu0 0
  %386 = vmatpush1.bf16.msra.mxu0 0
  %387 = vmatprep.subr.bf16.mxu0 0
  %388 = vmatpush1.bf16.msra.mxu0 0
  %389 = vmatprep.subr.bf16.mxu0 0
  %390 = vmatpush1.bf16.msra.mxu0 0
  %391 = vmatprep.subr.bf16.mxu0 0
  %392 = vmatpush1.bf16.msra.mxu0 0
  %393 = vmatprep.subr.bf16.mxu0 0
  %394 = vmatpush1.bf16.msra.mxu0 0
  %395 = vmatprep.subr.bf16.mxu0 0
  %396 = vmatpush1.bf16.msra.mxu0 0
  %397 = vmatprep.subr.bf16.mxu0 0
  %398 = vmatpush1.bf16.msra.mxu0 0
  %399 = vmatprep.subr.bf16.mxu0 0
  %400 = vmatpush1.bf16.msra.mxu0 0
  %401 = vmatprep.mubr.bf16.mxu0 0
  %402 = vmatmul.mubr.bf16.gmra.mrb[0].mxu0 %v367
  %v403 = vpop.f32.mrb[0].mxu0
  %v404 = vadd.f32 %v354, %v403
  %v405 = vpop.f32.mrb[0].mxu0
  %v406 = vadd.f32 %v354, %v405
  %v407 = vpop.f32.mrb[0].mxu0
  %v408 = vadd.f32 %v359, %v407
  %v409 = vpop.f32.mrb[0].mxu0
  %v410 = vadd.f32 %v359, %v409
  %411 = vdwg.mxu0
  %412 = vmatprep.subr.bf16.mxu0 %v348
  %413 = vmatpush1.bf16.msra.mxu0 %v347
  %414 = vmatprep.subr.bf16.mxu0 0
  %415 = vmatpush1.bf16.msra.mxu0 0
  %416 = vmatprep.subr.bf16.mxu0 0
  %417 = vmatpush1.bf16.msra.mxu0 0
  %418 = vmatprep.subr.bf16.mxu0 0
  %419 = vmatpush1.bf16.msra.mxu0 0
  %420 = vmatprep.subr.bf16.mxu0 0
  %421 = vmatpush1.bf16.msra.mxu0 0
  %422 = vmatprep.subr.bf16.mxu0 0
  %423 = vmatpush1.bf16.msra.mxu0 0
  %424 = vmatprep.subr.bf16.mxu0 0
  %425 = vmatpush1.bf16.msra.mxu0 0
  %426 = vmatprep.subr.bf16.mxu0 0
  %427 = vmatpush1.bf16.msra.mxu0 0
  %428 = vmatprep.subr.bf16.mxu0 0
  %429 = vmatpush1.bf16.msra.mxu0 0
  %430 = vmatprep.subr.bf16.mxu0 0
  %431 = vmatpush1.bf16.msra.mxu0 0
  %432 = vmatprep.subr.bf16.mxu0 0
  %433 = vmatpush1.bf16.msra.mxu0 0
  %434 = vmatprep.subr.bf16.mxu0 0
  %435 = vmatpush1.bf16.msra.mxu0 0
  %436 = vmatprep.subr.bf16.mxu0 0
  %437 = vmatpush1.bf16.msra.mxu0 0
  %438 = vmatprep.subr.bf16.mxu0 0
  %439 = vmatpush1.bf16.msra.mxu0 0
  %440 = vmatprep.subr.bf16.mxu0 0
  %441 = vmatpush1.bf16.msra.mxu0 0
  %442 = vmatprep.subr.bf16.mxu0 0
  %443 = vmatpush1.bf16.msra.mxu0 0
  %444 = vmatprep.mubr.bf16.mxu0 0
  %445 = vmatmul.mubr.bf16.gmra.mrb[0].mxu0 %v367
  %v446 = vpop.f32.mrb[0].mxu0
  %v447 = vadd.f32 %v354, %v446
  %v448 = vpop.f32.mrb[0].mxu0
  %v449 = vadd.f32 %v354, %v448
  %v450 = vpop.f32.mrb[0].mxu0
  %v451 = vadd.f32 %v359, %v450
  %v452 = vpop.f32.mrb[0].mxu0
  %v453 = vadd.f32 %v359, %v452
  %454 = vdwg.mxu0
  %v455 = vmax.f32 %v404, 0.0
  %v456 = vmax.f32 %v406, 0.0
  %v457 = vmax.f32 %v447, 0.0
  %v458 = vmax.f32 %v449, 0.0
  %v459 = vmax.f32 %v408, 0.0
  %v460 = vmax.f32 %v410, 0.0
  %v461 = vmax.f32 %v451, 0.0
  %v462 = vmax.f32 %v453, 0.0
  %v463 = vld [vmem:[%s5] sm:$0xf]
  %v464 = vld [vmem:[%s5 + $0x4] sm:$0xf]
  %v465 = vld [vmem:[%s5 + $0x8] sm:$0xf]
  %v466 = vld [vmem:[%s5 + $0xc] sm:$0xf]
  %v467 = vpack.c.bf16 %v459, %v455
  %v468 = vpack.c.bf16 %v460, %v456
  %v469 = vpack.c.bf16 %v461, %v457
  %v470 = vpack.c.bf16 %v462, %v458
  %v471 = vld [vmem:[%s6] sm:$0xff]
  %v472 = vld [vmem:[%s6 + $0x8] sm:$0xff]
  %v473 = vld [vmem:[%s6 + $0x10] sm:$0xff]
  %v474 = vld [vmem:[%s6 + $0x18] sm:$0xff]
  %476 = vset.pattern.permute.xlu0 0
  %477 = vperm.xlu0 %476, %v471
  %v478 = vpop.permute.xlu0 %477
  %481 = vset.pattern.permute.xlu0 0
  %482 = vperm.xlu0 %481, %v472
  %v483 = vpop.permute.xlu0 %482
  %486 = vset.pattern.permute.xlu0 0
  %487 = vperm.xlu0 %486, %v473
  %v488 = vpop.permute.xlu0 %487
  %491 = vset.pattern.permute.xlu0 0
  %492 = vperm.xlu0 %491, %v474
  %v493 = vpop.permute.xlu0 %492
  %v499 = vunpack.c.l.b16 %v463
  %v500 = vunpack.c.l.b16 %v464
  %v501 = vunpack.c.l.b16 %v465
  %v502 = vunpack.c.l.b16 %v466
  %v503 = vpack.c.b16 %v500, %v499
  %v504 = vpack.c.b16 %v502, %v501
  %v506 = vsel %vm58, %v503, 0
  %v509 = vsel %vm58, %v504, 0
  %511 = vmatprep.subr.bf16.mxu0 %v468
  %512 = vmatpush1.bf16.msra.mxu0 %v467
  %513 = vmatprep.subr.bf16.mxu0 0
  %514 = vmatpush1.bf16.msra.mxu0 0
  %515 = vmatprep.subr.bf16.mxu0 0
  %516 = vmatpush1.bf16.msra.mxu0 0
  %517 = vmatprep.subr.bf16.mxu0 0
  %518 = vmatpush1.bf16.msra.mxu0 0
  %519 = vmatprep.subr.bf16.mxu0 0
  %520 = vmatpush1.bf16.msra.mxu0 0
  %521 = vmatprep.subr.bf16.mxu0 0
  %522 = vmatpush1.bf16.msra.mxu0 0
  %523 = vmatprep.subr.bf16.mxu0 0
  %524 = vmatpush1.bf16.msra.mxu0 0
  %525 = vmatprep.subr.bf16.mxu0 0
  %526 = vmatpush1.bf16.msra.mxu0 0
  %527 = vmatprep.subr.bf16.mxu0 0
  %528 = vmatpush1.bf16.msra.mxu0 0
  %529 = vmatprep.subr.bf16.mxu0 0
  %530 = vmatpush1.bf16.msra.mxu0 0
  %531 = vmatprep.subr.bf16.mxu0 0
  %532 = vmatpush1.bf16.msra.mxu0 0
  %533 = vmatprep.subr.bf16.mxu0 0
  %534 = vmatpush1.bf16.msra.mxu0 0
  %535 = vmatprep.subr.bf16.mxu0 0
  %536 = vmatpush1.bf16.msra.mxu0 0
  %537 = vmatprep.subr.bf16.mxu0 0
  %538 = vmatpush1.bf16.msra.mxu0 0
  %539 = vmatprep.subr.bf16.mxu0 0
  %540 = vmatpush1.bf16.msra.mxu0 0
  %541 = vmatprep.subr.bf16.mxu0 0
  %542 = vmatpush1.bf16.msra.mxu0 0
  %543 = vmatprep.mubr.bf16.mxu0 0
  %544 = vmatmul.mubr.bf16.gmra.mrb[0].mxu0 %v506
  %v545 = vpop.f32.mrb[0].mxu0
  %v546 = vadd.f32 %v478, %v545
  %v547 = vpop.f32.mrb[0].mxu0
  %v548 = vadd.f32 %v478, %v547
  %v549 = vpop.f32.mrb[0].mxu0
  %v550 = vadd.f32 %v483, %v549
  %v551 = vpop.f32.mrb[0].mxu0
  %v552 = vadd.f32 %v483, %v551
  %553 = vmatprep.mubr.bf16.mxu0 0
  %554 = vmatmul.mubr.bf16.gmra.mrb[0].mxu0 %v509
  %v555 = vpop.f32.mrb[0].mxu0
  %v556 = vadd.f32 %v488, %v555
  %v557 = vpop.f32.mrb[0].mxu0
  %v558 = vadd.f32 %v488, %v557
  %v559 = vpop.f32.mrb[0].mxu0
  %v560 = vadd.f32 %v493, %v559
  %v561 = vpop.f32.mrb[0].mxu0
  %v562 = vadd.f32 %v493, %v561
  %563 = vdwg.mxu0
  %564 = vmatprep.subr.bf16.mxu0 %v470
  %565 = vmatpush1.bf16.msra.mxu0 %v469
  %566 = vmatprep.subr.bf16.mxu0 0
  %567 = vmatpush1.bf16.msra.mxu0 0
  %568 = vmatprep.subr.bf16.mxu0 0
  %569 = vmatpush1.bf16.msra.mxu0 0
  %570 = vmatprep.subr.bf16.mxu0 0
  %571 = vmatpush1.bf16.msra.mxu0 0
  %572 = vmatprep.subr.bf16.mxu0 0
  %573 = vmatpush1.bf16.msra.mxu0 0
  %574 = vmatprep.subr.bf16.mxu0 0
  %575 = vmatpush1.bf16.msra.mxu0 0
  %576 = vmatprep.subr.bf16.mxu0 0
  %577 = vmatpush1.bf16.msra.mxu0 0
  %578 = vmatprep.subr.bf16.mxu0 0
  %579 = vmatpush1.bf16.msra.mxu0 0
  %580 = vmatprep.subr.bf16.mxu0 0
  %581 = vmatpush1.bf16.msra.mxu0 0
  %582 = vmatprep.subr.bf16.mxu0 0
  %583 = vmatpush1.bf16.msra.mxu0 0
  %584 = vmatprep.subr.bf16.mxu0 0
  %585 = vmatpush1.bf16.msra.mxu0 0
  %586 = vmatprep.subr.bf16.mxu0 0
  %587 = vmatpush1.bf16.msra.mxu0 0
  %588 = vmatprep.subr.bf16.mxu0 0
  %589 = vmatpush1.bf16.msra.mxu0 0
  %590 = vmatprep.subr.bf16.mxu0 0
  %591 = vmatpush1.bf16.msra.mxu0 0
  %592 = vmatprep.subr.bf16.mxu0 0
  %593 = vmatpush1.bf16.msra.mxu0 0
  %594 = vmatprep.subr.bf16.mxu0 0
  %595 = vmatpush1.bf16.msra.mxu0 0
  %596 = vmatprep.mubr.bf16.mxu0 0
  %597 = vmatmul.mubr.bf16.gmra.mrb[0].mxu0 %v506
  %v598 = vpop.f32.mrb[0].mxu0
  %v599 = vadd.f32 %v478, %v598
  %v600 = vpop.f32.mrb[0].mxu0
  %v601 = vadd.f32 %v478, %v600
  %v602 = vpop.f32.mrb[0].mxu0
  %v603 = vadd.f32 %v483, %v602
  %v604 = vpop.f32.mrb[0].mxu0
  %v605 = vadd.f32 %v483, %v604
  %606 = vmatprep.mubr.bf16.mxu0 0
  %607 = vmatmul.mubr.bf16.gmra.mrb[0].mxu0 %v509
  %v608 = vpop.f32.mrb[0].mxu0
  %v609 = vadd.f32 %v488, %v608
  %v610 = vpop.f32.mrb[0].mxu0
  %v611 = vadd.f32 %v488, %v610
  %v612 = vpop.f32.mrb[0].mxu0
  %v613 = vadd.f32 %v493, %v612
  %v614 = vpop.f32.mrb[0].mxu0
  %v615 = vadd.f32 %v493, %v614
  %616 = vdwg.mxu0
  %v617 = vmax.f32 %v546, 0.0
  %v618 = vmax.f32 %v548, 0.0
  %v619 = vmax.f32 %v599, 0.0
  %v620 = vmax.f32 %v601, 0.0
  %v621 = vmax.f32 %v550, 0.0
  %v622 = vmax.f32 %v552, 0.0
  %v623 = vmax.f32 %v603, 0.0
  %v624 = vmax.f32 %v605, 0.0
  %v625 = vmax.f32 %v556, 0.0
  %v626 = vmax.f32 %v558, 0.0
  %v627 = vmax.f32 %v609, 0.0
  %v628 = vmax.f32 %v611, 0.0
  %v629 = vmax.f32 %v560, 0.0
  %v630 = vmax.f32 %v562, 0.0
  %v631 = vmax.f32 %v613, 0.0
  %v632 = vmax.f32 %v615, 0.0
  %633 = vst [vmem:[%s7] sm:$0xff] %v617
  %634 = vst [vmem:[%s7 + $0x8] sm:$0xff] %v618
  %635 = vst [vmem:[%s7 + $0x10] sm:$0xff] %v619
  %636 = vst [vmem:[%s7 + $0x18] sm:$0xff] %v620
  %637 = vst [vmem:[%s7 + $0x20] sm:$0xff] %v621
  %638 = vst [vmem:[%s7 + $0x28] sm:$0xff] %v622
  %639 = vst [vmem:[%s7 + $0x30] sm:$0xff] %v623
  %640 = vst [vmem:[%s7 + $0x38] sm:$0xff] %v624
  %641 = vst [vmem:[%s7 + $0x40] sm:$0xff] %v625
  %642 = vst [vmem:[%s7 + $0x48] sm:$0xff] %v626
  %643 = vst [vmem:[%s7 + $0x50] sm:$0xff] %v627
  %644 = vst [vmem:[%s7 + $0x58] sm:$0xff] %v628
  %645 = vst [vmem:[%s7 + $0x60] sm:$0xff] %v629
  %646 = vst [vmem:[%s7 + $0x68] sm:$0xff] %v630
  %647 = vst [vmem:[%s7 + $0x70] sm:$0xff] %v631
  %648 = vst [vmem:[%s7 + $0x78] sm:$0xff] %v632
  // Predicated region
  $region30: #{decoder_block_forward.1} parent=0 // pred_check
    _
  $region31: #{decoder_block_forward.1} parent=0 // pred_check_branch
    %650 = sbr.rel (0) target = $region33
  $region32: #{decoder_block_forward.1} parent=0 // pred_region
    _
  $region33: #{decoder_block_forward.1} parent=0 // pred_fallthru
    _
  // Predicated region
  $region34: #{decoder_block_forward.1} parent=0 // pred_check
    _
  $region35: #{decoder_block_forward.1} parent=0 // pred_check_branch
    %652 = sbr.rel (0) target = $region37
  $region36: #{decoder_block_forward.1} parent=0 // pred_region
    _
  $region37: #{decoder_block_forward.1} parent=0 // pred_fallthru
    _

</llo_original>
